<compile_context>
chip_gen: v7x
topology: tpu7x:2x2x1
jax: 0.10.0
libtpu: 0.0.40
codegen_flags: <defaults>
</compile_context>

<pallas_src>
import functools

import jax
import jax.numpy as jnp
from jax.experimental import pallas as pl
from jax.experimental.pallas import tpu as pltpu

_LANES = 128
_SUBLANES = 8
_MAX_BLOCK_ROWS = 2048  # (2048,128) f32 = 1 MiB per input per buffer


def _si_partial_kernel(pred_ref, tgt_ref, sum_ref, sq_ref, *,
                       block_rows, total_rows, need_mask):
    """Per-block partial sums of g and g^2, folded to an (8, 128) tile."""
    p = pred_ref[...].astype(jnp.float32)
    t = tgt_ref[...].astype(jnp.float32)
    # One transcendental instead of two: log(p) - log(t) == log(p / t).
    g = jnp.log(p / t)
    if need_mask:
        # The last (partial) grid block reads out-of-bounds garbage rows:
        # zero them before BOTH the sum and the sum-of-squares.
        row = (pl.program_id(0) * block_rows
               + jax.lax.broadcasted_iota(jnp.int32, g.shape, 0))
        g = jnp.where(row < total_rows, g, 0.0)
    # Fold (block_rows, 128) -> (8, 128) with pure VPU adds (no XLU, no SMEM
    # round-trip); the single cross-lane reduction happens once, outside.
    gf = g.reshape(block_rows // _SUBLANES, _SUBLANES, _LANES)
    sum_ref[...] = jnp.sum(gf, axis=0)
    sq_ref[...] = jnp.sum(gf * gf, axis=0)


def scale_invariant_loss(pred, target, *, lamda=0.85, alpha=10.0,
                         loss_weight=1.0):
    """pred, target: (N,) positive arrays. Returns scalar float32 loss."""
    assert pred.shape == target.shape and pred.ndim == 1
    n = pred.shape[0]

    # Zero-copy path when N is lane-aligned and at least one (8,128) tile;
    # otherwise pad BOTH arrays with 1.0 so padded elements give g == 0.
    n_pad = max(pl.cdiv(n, _LANES) * _LANES, _SUBLANES * _LANES)
    if n_pad != n:
        ones = jnp.ones((n_pad - n,), dtype=pred.dtype)
        pred = jnp.concatenate([pred, ones])
        target = jnp.concatenate([target, ones.astype(target.dtype)])

    rows = n_pad // _LANES  # >= 8
    block_rows = min(_MAX_BLOCK_ROWS, (rows // _SUBLANES) * _SUBLANES)
    num_blocks = pl.cdiv(rows, block_rows)
    need_mask = (rows % block_rows) != 0

    pred_2d = pred.reshape(rows, _LANES)   # layout-preserving, no copy
    tgt_2d = target.reshape(rows, _LANES)

    kernel = functools.partial(_si_partial_kernel, block_rows=block_rows,
                               total_rows=rows, need_mask=need_mask)

    part_sum, part_sq = pl.pallas_call(
        kernel,
        out_shape=(
            jax.ShapeDtypeStruct((num_blocks, _SUBLANES, _LANES), jnp.float32),
            jax.ShapeDtypeStruct((num_blocks, _SUBLANES, _LANES), jnp.float32),
        ),
        grid=(num_blocks,),
        in_specs=[
            pl.BlockSpec((block_rows, _LANES), lambda i: (i, 0)),
            pl.BlockSpec((block_rows, _LANES), lambda i: (i, 0)),
        ],
        out_specs=(
            pl.BlockSpec((None, _SUBLANES, _LANES), lambda i: (i, 0, 0)),
            pl.BlockSpec((None, _SUBLANES, _LANES), lambda i: (i, 0, 0)),
        ),
        compiler_params=pltpu.CompilerParams(
            dimension_semantics=("parallel",)),
    )(pred_2d, tgt_2d)

    # Tiny scalar epilogue in plain JAX; per-block partial outputs keep the
    # grid axis "parallel" so both TensorCores sweep memory on v7x.
    sum_g = jnp.sum(part_sum)
    sum_g2 = jnp.sum(part_sq)
    n_f = jnp.float32(n)
    mean = sum_g / n_f
    # Unbiased variance (torch.var default): (sum(g^2) - N*mean^2) / (N - 1).
    # N == 1 gives NaN, matching the PyTorch module's behavior.
    var = (sum_g2 - n_f * mean * mean) / (n_f - 1.0)
    dg = var + (1.0 - lamda) * mean * mean
    return loss_weight * alpha * jnp.sqrt(dg)


def _reference(pred, target, lamda=0.85, alpha=10.0, loss_weight=1.0):
    g = jnp.log(pred) - jnp.log(target)
    dg = jnp.var(g, ddof=1) + (1.0 - lamda) * jnp.mean(g) ** 2
    return loss_weight * alpha * jnp.sqrt(dg)


if __name__ == "__main__":
    key = jax.random.PRNGKey(0)
    k1, k2, k3, k4 = jax.random.split(key, 4)

    # Case 1: N not a multiple of 128 -> exercises the small padding path.
    n1 = 2000
    pred1 = jax.random.uniform(k1, (n1,), jnp.float32, minval=0.1, maxval=5.0)
    tgt1 = jax.random.uniform(k2, (n1,), jnp.float32, minval=0.1, maxval=5.0)

    # Case 2: N multiple of 128 with rows % block_rows != 0 -> exercises the
    # zero-copy path plus in-kernel tail masking.
    n2 = 2560
    pred2 = jax.random.uniform(k3, (n2,), jnp.float32, minval=0.1, maxval=5.0)
    tgt2 = jax.random.uniform(k4, (n2,), jnp.float32, minval=0.1, maxval=5.0)

    for p_, t_ in ((pred1, tgt1), (pred2, tgt2)):
        loss = jax.block_until_ready(scale_invariant_loss(p_, t_))
        ref = _reference(p_, t_)
        assert jnp.allclose(loss, ref, rtol=1e-4, atol=1e-5), (loss, ref)
    print("KERNEL_OK")
</pallas_src>

<mosaic_0001>
module attributes {stable_mosaic.version = 11 : i64} {
  func.func @_si_partial_kernel(%arg0: i32, %arg1: memref<16x128xf32, #tpu.memory_space<vmem>>, %arg2: memref<16x128xf32, #tpu.memory_space<vmem>>, %arg3: memref<1x8x128xf32, #tpu.memory_space<vmem>>, %arg4: memref<1x8x128xf32, #tpu.memory_space<vmem>>) attributes {dimension_semantics = [#tpu.dimension_semantics<parallel>], iteration_bounds = array<i64: 1>, scalar_prefetch = 0 : i64, scratch_operands = 0 : i64, tpu.core_type = #tpu.core_type<tc>, window_params = [{transform_indices = @transform_0, window_bounds = array<i64: 16, 128>}, {transform_indices = @transform_1, window_bounds = array<i64: 16, 128>}, {transform_indices = @transform_2, window_bounds = array<i64: 1, 8, 128>}, {transform_indices = @transform_3, window_bounds = array<i64: 1, 8, 128>}]} {
    %c0 = arith.constant 0 : index
    %c0_0 = arith.constant 0 : index
    %0 = vector.load %arg1[%c0, %c0_0] : memref<16x128xf32, #tpu.memory_space<vmem>>, vector<16x128xf32>
    %c0_1 = arith.constant 0 : index
    %c0_2 = arith.constant 0 : index
    %1 = vector.load %arg2[%c0_1, %c0_2] : memref<16x128xf32, #tpu.memory_space<vmem>>, vector<16x128xf32>
    %2 = arith.divf %0, %1 : vector<16x128xf32>
    %3 = math.log %2 : vector<16x128xf32>
    %4 = vector.shape_cast %3 : vector<16x128xf32> to vector<2x8x128xf32>
    %cst = arith.constant dense<0.000000e+00> : vector<8x128xf32>
    %5 = vector.multi_reduction <add>, %4, %cst [0] : vector<2x8x128xf32> to vector<8x128xf32>
    %c0_3 = arith.constant 0 : index
    %c0_4 = arith.constant 0 : index
    %c0_5 = arith.constant 0 : index
    %6 = vector.load %arg3[%c0_3, %c0_4, %c0_5] : memref<1x8x128xf32, #tpu.memory_space<vmem>>, vector<1x8x128xf32>
    %7 = vector.shape_cast %6 : vector<1x8x128xf32> to vector<8x128xf32>
    %8 = vector.shape_cast %5 : vector<8x128xf32> to vector<1x8x128xf32>
    tpu.vector_store %arg3[%c0_3, %c0_4, %c0_5], %8 {strides = array<i32>} : memref<1x8x128xf32, #tpu.memory_space<vmem>>, vector<1x8x128xf32>,
    %9 = arith.mulf %4, %4 : vector<2x8x128xf32>
    %cst_6 = arith.constant dense<0.000000e+00> : vector<8x128xf32>
    %10 = vector.multi_reduction <add>, %9, %cst_6 [0] : vector<2x8x128xf32> to vector<8x128xf32>
    %c0_7 = arith.constant 0 : index
    %c0_8 = arith.constant 0 : index
    %c0_9 = arith.constant 0 : index
    %11 = vector.load %arg4[%c0_7, %c0_8, %c0_9] : memref<1x8x128xf32, #tpu.memory_space<vmem>>, vector<1x8x128xf32>
    %12 = vector.shape_cast %11 : vector<1x8x128xf32> to vector<8x128xf32>
    %13 = vector.shape_cast %10 : vector<8x128xf32> to vector<1x8x128xf32>
    tpu.vector_store %arg4[%c0_7, %c0_8, %c0_9], %13 {strides = array<i32>} : memref<1x8x128xf32, #tpu.memory_space<vmem>>, vector<1x8x128xf32>,
    return
  }
  func.func @transform_0(%arg0: i32) -> (i32, i32) {
    %c0_i32 = arith.constant 0 : i32
    %c0_i32_0 = arith.constant 0 : i32
    return %arg0, %c0_i32 : i32, i32
  }
  func.func @transform_1(%arg0: i32) -> (i32, i32) {
    %c0_i32 = arith.constant 0 : i32
    %c0_i32_0 = arith.constant 0 : i32
    return %arg0, %c0_i32 : i32, i32
  }
  func.func @transform_2(%arg0: i32) -> (i32, i32, i32) {
    %c0_i32 = arith.constant 0 : i32
    %c0_i32_0 = arith.constant 0 : i32
    %c0_i32_1 = arith.constant 0 : i32
    return %arg0, %c0_i32, %c0_i32_0 : i32, i32, i32
  }
  func.func @transform_3(%arg0: i32) -> (i32, i32, i32) {
    %c0_i32 = arith.constant 0 : i32
    %c0_i32_0 = arith.constant 0 : i32
    %c0_i32_1 = arith.constant 0 : i32
    return %arg0, %c0_i32, %c0_i32_0 : i32, i32, i32
  }
}

</mosaic_0001>

<llo_original>
// kernel: tpu_custom_call.1
$region0: #{tpu_custom_call.1}
  #allocation0 [shape = 'u32[]', space=smem, size = 0x4, offset = 0x4, fixed_abs, tag = 'smem constant byte address 0x4 - core index']
  #allocation1 [shape = 'u32[144,128]{1,0:T(1,128)}', space=vmem, size = 0x12000, scoped, tag = 'internal scratch']
  %s0 = inlined_call_operand.hbm [shape: f32[16,128], index: 0, kind: input, shape index: {}]
  %s1 = inlined_call_operand.hbm [shape: f32[16,128], index: 1, kind: input, shape index: {}]
  %s2 = inlined_call_operand.hbm [shape: f32[1,8,128], index: 2, kind: output, shape index: {0}]
  %s3 = inlined_call_operand.hbm [shape: f32[1,8,128], index: 3, kind: output, shape index: {1}]
  %4 = xla_tuple %s2, %s3
  %s5 = sld [smem:[#allocation0]]
  $region34: #{tpu_custom_call.1} parent=0
    _
  %s7 = ssub.s32 1, %s5
  %s8 = scalar_select 0, %s7, %s5
  $region1: #{tpu_custom_call.1} parent=0
    #allocation2 [shape = 'u8[8192]{0}', space=vmem, size = 0x2000, scoped, tag = 'input window, operand 0, single buffered']
    #allocation3 [shape = 's32[1]{0}', space=sflag, size = 0x4, scoped, tag = 'scoped memory for tpu_custom_call.1']
    #allocation4 [shape = 's32[1]{0}', space=sflag, size = 0x4, scoped, tag = 'scoped memory for tpu_custom_call.1']
    #allocation5 [shape = 'u8[8192]{0}', space=vmem, size = 0x2000, scoped, tag = 'input window, operand 1, single buffered']
    #allocation6 [shape = 's32[1]{0}', space=sflag, size = 0x4, scoped, tag = 'scoped memory for tpu_custom_call.1']
    #allocation7 [shape = 'u8[4096]{0}', space=vmem, size = 0x1000, scoped, tag = 'output window, operand 0, single buffered']
    #allocation8 [shape = 'u8[4096]{0}', space=vmem, size = 0x1000, scoped, tag = 'output window, operand 1, single buffered']
    #allocation9 [shape = 's32[1]{0}', space=sflag, size = 0x4, scoped, tag = 'scoped memory for tpu_custom_call.1']
    %9 = vsyncpa [#allocation3], 0
    %10 = vsyncpa [#allocation6], 0
    %11 = vsyncpa [#allocation4], 0
    %12 = vsyncpa [#allocation9], 0
    // Predicated region
    $region2: #{tpu_custom_call.1} parent=1 // pred_check
      _
    $region3: #{tpu_custom_call.1} parent=1 // pred_check_branch
      %14 = sbr.rel (0) target = $region5
    $region4: #{tpu_custom_call.1} parent=1 // pred_region
      %s16 = ssub.s32 256, 256
      %17 = vsyncadd [#allocation3], %s16
      %s18 = sshll.u32 [#allocation2], 4
      %s19 = int_to_ptr.vmem [resolvable:$true] %s18
      %24 = dma.hbm_to_vmem [thread:$0]  %s0, 256, %s19, [#allocation3], 128, 128, 8
    $region5: #{tpu_custom_call.1} parent=1 // pred_fallthru
      _
    // Predicated region
    $region6: #{tpu_custom_call.1} parent=1 // pred_check
      _
    $region7: #{tpu_custom_call.1} parent=1 // pred_check_branch
      %26 = sbr.rel (0) target = $region9
    $region8: #{tpu_custom_call.1} parent=1 // pred_region
      %s28 = ssub.s32 256, 256
      %29 = vsyncadd [#allocation6], %s28
      %s30 = sshll.u32 [#allocation5], 4
      %s31 = int_to_ptr.vmem [resolvable:$true] %s30
      %36 = dma.hbm_to_vmem [thread:$0]  %s1, 256, %s31, [#allocation6], 128, 128, 8
    $region9: #{tpu_custom_call.1} parent=1 // pred_fallthru
      _
    // Predicated region
    $region10: #{tpu_custom_call.1} parent=1 // pred_check
      _
    $region11: #{tpu_custom_call.1} parent=1 // pred_check_branch
      %38 = sbr.rel (0) target = $region13
    $region12: #{tpu_custom_call.1} parent=1 // pred_region
      %39 = dma.done [#allocation3], 256
    $region13: #{tpu_custom_call.1} parent=1 // pred_fallthru
      _
    // Predicated region
    $region14: #{tpu_custom_call.1} parent=1 // pred_check
      _
    $region15: #{tpu_custom_call.1} parent=1 // pred_check_branch
      %41 = sbr.rel (0) target = $region17
    $region16: #{tpu_custom_call.1} parent=1 // pred_region
      %42 = dma.done [#allocation6], 256
    $region17: #{tpu_custom_call.1} parent=1 // pred_fallthru
      _
    %v43 = vld [vmem:[#allocation2] sm:$0xff]
    %v44 = vld [vmem:[#allocation2 + $0x8] sm:$0xff]
    %v45 = vld [vmem:[#allocation5] sm:$0xff]
    %v46 = vld [vmem:[#allocation5 + $0x8] sm:$0xff]
    %v47 = vrcp.pop %v45
    %v48 = vmul.f32 %v43, %v47
    %v49 = vrcp.pop %v46
    %v50 = vmul.f32 %v44, %v49
    %v51 = vlog2.pop %v48
    %v52 = vmul.f32 %v51, 0.6931472
    %v53 = vlog2.pop %v50
    %v54 = vmul.f32 %v53, 0.6931472
    %v55 = vadd.f32 %v52, %v54
    %56 = vst [vmem:[#allocation7] sm:$0xff] %v55
    %v57 = vmul.f32 %v52, %v52
    %v58 = vmul.f32 %v54, %v54
    %v59 = vadd.f32 %v57, %v58
    %60 = vst [vmem:[#allocation8] sm:$0xff] %v59
    // Predicated region
    $region18: #{tpu_custom_call.1} parent=1 // pred_check
      _
    $region19: #{tpu_custom_call.1} parent=1 // pred_check_branch
      %62 = sbr.rel (0) target = $region21
    $region20: #{tpu_custom_call.1} parent=1 // pred_region
      %s64 = ssub.s32 128, 128
      %65 = vsyncadd [#allocation4], %s64
      %s67 = sshll.u32 [#allocation7], 4
      %s68 = int_to_ptr.vmem [resolvable:$true] %s67
      %70 = dma.vmem_to_hbm [thread:$0]  %s68, 128, %s2, [#allocation4]
    $region21: #{tpu_custom_call.1} parent=1 // pred_fallthru
      _
    // Predicated region
    $region22: #{tpu_custom_call.1} parent=1 // pred_check
      _
    $region23: #{tpu_custom_call.1} parent=1 // pred_check_branch
      %72 = sbr.rel (0) target = $region25
    $region24: #{tpu_custom_call.1} parent=1 // pred_region
      %s74 = ssub.s32 128, 128
      %75 = vsyncadd [#allocation9], %s74
      %s77 = sshll.u32 [#allocation8], 4
      %s78 = int_to_ptr.vmem [resolvable:$true] %s77
      %80 = dma.vmem_to_hbm [thread:$0]  %s78, 128, %s3, [#allocation9]
    $region25: #{tpu_custom_call.1} parent=1 // pred_fallthru
      _
    // Predicated region
    $region26: #{tpu_custom_call.1} parent=1 // pred_check
      _
    $region27: #{tpu_custom_call.1} parent=1 // pred_check_branch
      %82 = sbr.rel (0) target = $region29
    $region28: #{tpu_custom_call.1} parent=1 // pred_region
      %83 = dma.done [#allocation4], 128
    $region29: #{tpu_custom_call.1} parent=1 // pred_fallthru
      _
    // Predicated region
    $region30: #{tpu_custom_call.1} parent=1 // pred_check
      _
    $region31: #{tpu_custom_call.1} parent=1 // pred_check_branch
      %85 = sbr.rel (0) target = $region33
    $region32: #{tpu_custom_call.1} parent=1 // pred_region
      %86 = dma.done [#allocation9], 128
    $region33: #{tpu_custom_call.1} parent=1 // pred_fallthru
      _
    %87 = vsyncpa [#allocation3], 1
    %88 = vsyncpa [#allocation6], 1
    %89 = vsyncpa [#allocation4], 1
    %90 = vsyncpa [#allocation9], 1

</llo_original>
